<compile_context>
chip_gen: v7x
topology: tpu7x:2x2x1
jax: 0.10.0
libtpu: 0.0.40
codegen_flags: <defaults>
</compile_context>

<pallas_src>
import functools

import jax
import jax.numpy as jnp
from jax.experimental import pallas as pl
from jax.experimental.pallas import tpu as pltpu

IN_F = 3        # linear1 in_features
HID_F = 10      # linear1 out_features / linear2 in_features
OUT_F = 3       # linear2 out_features
LANE = 128      # vreg lane width
CHUNK_ROWS = 16  # sublane-rows per inner-loop step (2 f32 vregs per value)


def advisor_kernel(w1_ref, b1_ref, w2_ref, b2_ref, x_ref, o_ref):
    """x_ref: (IN_F, tile_rows, 128) f32 -> o_ref: (OUT_F, tile_rows, 128) f32.

    Weights/biases live in SMEM; each scalar is splat across lanes by the VPU.
    Biases are folded into the accumulator init. Per chunk, all temporaries
    (3 input + 10 hidden + 1 accumulator slabs of (CHUNK_ROWS, 128)) stay in
    vregs (~30 of 64), so there is no VMEM-backed intermediate traffic.
    """
    tile_rows = x_ref.shape[1]
    n_chunks = tile_rows // CHUNK_ROWS  # static; tile_rows is a CHUNK multiple

    @pl.loop(0, n_chunks)
    def _(c):
        r0 = pl.multiple_of(c * CHUNK_ROWS, CHUNK_ROWS)
        rows = pl.ds(r0, CHUNK_ROWS)

        # Dense (CHUNK_ROWS, 128) input slabs, one per feature.
        xs = [x_ref[k, rows, :] for k in range(IN_F)]

        # Hidden layer: h_n = relu(b1[n] + sum_k w1[n,k] * x_k)  (unrolled FMAs)
        hs = []
        for n in range(HID_F):
            acc = xs[0] * w1_ref[n, 0] + b1_ref[n]
            for k in range(1, IN_F):
                acc = acc + xs[k] * w1_ref[n, k]
            hs.append(jnp.maximum(acc, 0.0))

        # Output layer: y_m = b2[m] + sum_n w2[m,n] * h_n, stored row-by-row
        # (lane-dense, unmasked vst; no concatenate epilogue).
        for m in range(OUT_F):
            acc = hs[0] * w2_ref[m, 0] + b2_ref[m]
            for n in range(1, HID_F):
                acc = acc + hs[n] * w2_ref[m, n]
            o_ref[m, rows, :] = acc.astype(o_ref.dtype)


def _round_up(a, b):
    return ((a + b - 1) // b) * b


def _advisor_fm(x_fm, w1, b1, w2, b2, max_tile_rows):
    """Core: x_fm (IN_F, B) feature-major -> (OUT_F, B) f32."""
    B = x_fm.shape[1]
    x_fm = x_fm.astype(jnp.float32)

    # Balanced, lane/sublane-aligned tiling with <1% padding: "rows" are groups
    # of 128 batch elements; every tile is a multiple of CHUNK_ROWS sublanes.
    max_tile_rows = max(CHUNK_ROWS, (int(max_tile_rows) // CHUNK_ROWS) * CHUNK_ROWS)
    rows_needed = pl.cdiv(B, LANE)
    n_blocks = max(1, pl.cdiv(rows_needed, max_tile_rows))
    tile_rows = _round_up(pl.cdiv(rows_needed, n_blocks), CHUNK_ROWS)
    padded_rows = n_blocks * tile_rows
    padded_b = padded_rows * LANE

    # Single pad pass, then a free reshape to the sublane-dense (3, rows, 128)
    # layout. Zero-padded batch columns produce garbage that is sliced off.
    x3 = jnp.pad(x_fm, ((0, 0), (0, padded_b - B))).reshape(IN_F, padded_rows, LANE)

    smem = pl.BlockSpec(memory_space=pltpu.MemorySpace.SMEM)
    block_bytes = (IN_F + OUT_F) * tile_rows * LANE * 4      # in + out tile
    vmem_limit = int(2 * block_bytes + (8 << 20))            # double-buffered + headroom

    out3 = pl.pallas_call(
        advisor_kernel,
        out_shape=jax.ShapeDtypeStruct((OUT_F, padded_rows, LANE), jnp.float32),
        grid_spec=pltpu.PrefetchScalarGridSpec(
            num_scalar_prefetch=0,
            grid=(n_blocks,),
            in_specs=[
                smem,  # w1 (10, 3)
                smem,  # b1 (10,)
                smem,  # w2 (3, 10)
                smem,  # b2 (3,)
                pl.BlockSpec((IN_F, tile_rows, LANE), lambda i: (0, i, 0)),
            ],
            out_specs=pl.BlockSpec((OUT_F, tile_rows, LANE), lambda i: (0, i, 0)),
        ),
        compiler_params=pltpu.CompilerParams(
            dimension_semantics=("parallel",),  # shards blocks across v7x's 2 TCs
            vmem_limit_bytes=vmem_limit,
        ),
        # Pin the VPU-streaming (no-MXU) decision for XLA's scheduler:
        # ~130 VPU flops and 24 B of HBM per batch element.
        cost_estimate=pl.CostEstimate(
            flops=130 * padded_b, transcendentals=0, bytes_accessed=24 * padded_b),
    )(w1, b1, w2, b2, x3)

    return out3.reshape(OUT_F, padded_b)[:, :B]


@functools.partial(jax.jit, static_argnames=("max_tile_rows",))
def advisor_forward_fm(x_fm, w1, b1, w2, b2, *, max_tile_rows=2560):
    """Feature-major entry point: x_fm (3, B) -> (3, B).

    Preferred for large B: no transpose passes over HBM. max_tile_rows=2560
    streams ~327K batch elements (~7.5 MiB in+out) per grid step.
    """
    return _advisor_fm(x_fm, w1, b1, w2, b2, max_tile_rows)


@functools.partial(jax.jit, static_argnames=("max_tile_rows",))
def advisor_forward(x, w1, b1, w2, b2, *, max_tile_rows=2560):
    """PyTorch-layout entry point matching Advisor.forward: x (B, 3) -> (B, 3).

    The two transposes here are layout plumbing only; keep data feature-major
    upstream (advisor_forward_fm) to avoid the extra HBM passes for large B.
    """
    return _advisor_fm(x.T, w1, b1, w2, b2, max_tile_rows).T


def init_params(key):
    """Deterministic init mimicking nn.Linear's default (uniform +/- 1/sqrt(fan_in))."""
    k1, k2, k3, k4 = jax.random.split(key, 4)
    bound1 = 1.0 / jnp.sqrt(3.0)
    bound2 = 1.0 / jnp.sqrt(10.0)
    w1 = jax.random.uniform(k1, (HID_F, IN_F), jnp.float32, -bound1, bound1)
    b1 = jax.random.uniform(k2, (HID_F,), jnp.float32, -bound1, bound1)
    w2 = jax.random.uniform(k3, (OUT_F, HID_F), jnp.float32, -bound2, bound2)
    b2 = jax.random.uniform(k4, (OUT_F,), jnp.float32, -bound2, bound2)
    return w1, b1, w2, b2


if __name__ == "__main__":
    key = jax.random.PRNGKey(0)
    k_in1, k_in2, k_p = jax.random.split(key, 3)
    w1, b1, w2, b2 = init_params(k_p)

    def ref_fn(x):
        return jnp.maximum(x @ w1.T + b1, 0.0) @ w2.T + b2

    # Small batch, PyTorch-layout API (single tile).
    B1 = 8
    x1 = jax.random.normal(k_in1, (B1, IN_F), jnp.float32)
    out1 = jax.block_until_ready(advisor_forward(x1, w1, b1, w2, b2))
    assert out1.shape == (B1, OUT_F)
    assert jnp.allclose(out1, ref_fn(x1), atol=1e-5, rtol=1e-5)

    # Non-multiple batch through the feature-major API with a real multi-block
    # grid (exercises balanced tiling, padding slice-off, inner chunk loop).
    B2 = 4500
    x2 = jax.random.normal(k_in2, (B2, IN_F), jnp.float32)
    out2_fm = jax.block_until_ready(
        advisor_forward_fm(x2.T, w1, b1, w2, b2, max_tile_rows=16))
    assert out2_fm.shape == (OUT_F, B2)
    assert jnp.allclose(out2_fm.T, ref_fn(x2), atol=1e-5, rtol=1e-5)

    print("KERNEL_OK")
</pallas_src>

<mosaic_0001>
module attributes {stable_mosaic.version = 11 : i64} {
  func.func @advisor_kernel(%arg0: i32, %arg1: memref<10x3xf32, #tpu.memory_space<smem>>, %arg2: memref<10xf32, #tpu.memory_space<smem>>, %arg3: memref<3x10xf32, #tpu.memory_space<smem>>, %arg4: memref<3xf32, #tpu.memory_space<smem>>, %arg5: memref<3x16x128xf32, #tpu.memory_space<vmem>>, %arg6: memref<3x16x128xf32, #tpu.memory_space<vmem>>) attributes {dimension_semantics = [#tpu.dimension_semantics<parallel>], iteration_bounds = array<i64: 1>, scalar_prefetch = 0 : i64, scratch_operands = 0 : i64, tpu.core_type = #tpu.core_type<tc>, window_params = [{transform_indices = @transform_0, window_bounds = array<i64: 10, 3>}, {transform_indices = @transform_1, window_bounds = array<i64: 10>}, {transform_indices = @transform_2, window_bounds = array<i64: 3, 10>}, {transform_indices = @transform_3, window_bounds = array<i64: 3>}, {transform_indices = @transform_4, window_bounds = array<i64: 3, 16, 128>}, {transform_indices = @transform_5, window_bounds = array<i64: 3, 16, 128>}]} {
    %c0_i32 = arith.constant 0 : i32
    %c1_i32 = arith.constant 1 : i32
    %0 = arith.muli %c0_i32, %c1_i32 : i32
    %c0_i32_0 = arith.constant 0 : i32
    %1 = arith.addi %c0_i32_0, %0 : i32
    %c16_i32 = arith.constant 16 : i32
    %2 = arith.muli %1, %c16_i32 : i32
    %3 = tpu.assume_multiple %2, 16 : i32
    %c0 = arith.constant 0 : index
    %4 = arith.index_cast %3 : i32 to index
    %c0_1 = arith.constant 0 : index
    %5 = vector.load %arg5[%c0, %4, %c0_1] : memref<3x16x128xf32, #tpu.memory_space<vmem>>, vector<1x16x128xf32>
    %6 = vector.shape_cast %5 : vector<1x16x128xf32> to vector<16x128xf32>
    %c1 = arith.constant 1 : index
    %7 = arith.index_cast %3 : i32 to index
    %c0_2 = arith.constant 0 : index
    %8 = vector.load %arg5[%c1, %7, %c0_2] : memref<3x16x128xf32, #tpu.memory_space<vmem>>, vector<1x16x128xf32>
    %9 = vector.shape_cast %8 : vector<1x16x128xf32> to vector<16x128xf32>
    %c2 = arith.constant 2 : index
    %10 = arith.index_cast %3 : i32 to index
    %c0_3 = arith.constant 0 : index
    %11 = vector.load %arg5[%c2, %10, %c0_3] : memref<3x16x128xf32, #tpu.memory_space<vmem>>, vector<1x16x128xf32>
    %12 = vector.shape_cast %11 : vector<1x16x128xf32> to vector<16x128xf32>
    %c0_4 = arith.constant 0 : index
    %c0_5 = arith.constant 0 : index
    %13 = memref.load %arg1[%c0_4, %c0_5] : memref<10x3xf32, #tpu.memory_space<smem>>
    %14 = vector.broadcast %13 : f32 to vector<16x128xf32>
    %15 = arith.mulf %6, %14 : vector<16x128xf32>
    %c0_6 = arith.constant 0 : index
    %16 = memref.load %arg2[%c0_6] : memref<10xf32, #tpu.memory_space<smem>>
    %17 = vector.broadcast %16 : f32 to vector<16x128xf32>
    %18 = arith.addf %15, %17 : vector<16x128xf32>
    %c0_7 = arith.constant 0 : index
    %c1_8 = arith.constant 1 : index
    %19 = memref.load %arg1[%c0_7, %c1_8] : memref<10x3xf32, #tpu.memory_space<smem>>
    %20 = vector.broadcast %19 : f32 to vector<16x128xf32>
    %21 = arith.mulf %9, %20 : vector<16x128xf32>
    %22 = arith.addf %18, %21 : vector<16x128xf32>
    %c0_9 = arith.constant 0 : index
    %c2_10 = arith.constant 2 : index
    %23 = memref.load %arg1[%c0_9, %c2_10] : memref<10x3xf32, #tpu.memory_space<smem>>
    %24 = vector.broadcast %23 : f32 to vector<16x128xf32>
    %25 = arith.mulf %12, %24 : vector<16x128xf32>
    %26 = arith.addf %22, %25 : vector<16x128xf32>
    %cst = arith.constant 0.000000e+00 : f32
    %27 = vector.broadcast %cst : f32 to vector<16x128xf32>
    %28 = arith.maximumf %26, %27 : vector<16x128xf32>
    %c1_11 = arith.constant 1 : index
    %c0_12 = arith.constant 0 : index
    %29 = memref.load %arg1[%c1_11, %c0_12] : memref<10x3xf32, #tpu.memory_space<smem>>
    %30 = vector.broadcast %29 : f32 to vector<16x128xf32>
    %31 = arith.mulf %6, %30 : vector<16x128xf32>
    %c1_13 = arith.constant 1 : index
    %32 = memref.load %arg2[%c1_13] : memref<10xf32, #tpu.memory_space<smem>>
    %33 = vector.broadcast %32 : f32 to vector<16x128xf32>
    %34 = arith.addf %31, %33 : vector<16x128xf32>
    %c1_14 = arith.constant 1 : index
    %c1_15 = arith.constant 1 : index
    %35 = memref.load %arg1[%c1_14, %c1_15] : memref<10x3xf32, #tpu.memory_space<smem>>
    %36 = vector.broadcast %35 : f32 to vector<16x128xf32>
    %37 = arith.mulf %9, %36 : vector<16x128xf32>
    %38 = arith.addf %34, %37 : vector<16x128xf32>
    %c1_16 = arith.constant 1 : index
    %c2_17 = arith.constant 2 : index
    %39 = memref.load %arg1[%c1_16, %c2_17] : memref<10x3xf32, #tpu.memory_space<smem>>
    %40 = vector.broadcast %39 : f32 to vector<16x128xf32>
    %41 = arith.mulf %12, %40 : vector<16x128xf32>
    %42 = arith.addf %38, %41 : vector<16x128xf32>
    %cst_18 = arith.constant 0.000000e+00 : f32
    %43 = vector.broadcast %cst_18 : f32 to vector<16x128xf32>
    %44 = arith.maximumf %42, %43 : vector<16x128xf32>
    %c2_19 = arith.constant 2 : index
    %c0_20 = arith.constant 0 : index
    %45 = memref.load %arg1[%c2_19, %c0_20] : memref<10x3xf32, #tpu.memory_space<smem>>
    %46 = vector.broadcast %45 : f32 to vector<16x128xf32>
    %47 = arith.mulf %6, %46 : vector<16x128xf32>
    %c2_21 = arith.constant 2 : index
    %48 = memref.load %arg2[%c2_21] : memref<10xf32, #tpu.memory_space<smem>>
    %49 = vector.broadcast %48 : f32 to vector<16x128xf32>
    %50 = arith.addf %47, %49 : vector<16x128xf32>
    %c2_22 = arith.constant 2 : index
    %c1_23 = arith.constant 1 : index
    %51 = memref.load %arg1[%c2_22, %c1_23] : memref<10x3xf32, #tpu.memory_space<smem>>
    %52 = vector.broadcast %51 : f32 to vector<16x128xf32>
    %53 = arith.mulf %9, %52 : vector<16x128xf32>
    %54 = arith.addf %50, %53 : vector<16x128xf32>
    %c2_24 = arith.constant 2 : index
    %c2_25 = arith.constant 2 : index
    %55 = memref.load %arg1[%c2_24, %c2_25] : memref<10x3xf32, #tpu.memory_space<smem>>
    %56 = vector.broadcast %55 : f32 to vector<16x128xf32>
    %57 = arith.mulf %12, %56 : vector<16x128xf32>
    %58 = arith.addf %54, %57 : vector<16x128xf32>
    %cst_26 = arith.constant 0.000000e+00 : f32
    %59 = vector.broadcast %cst_26 : f32 to vector<16x128xf32>
    %60 = arith.maximumf %58, %59 : vector<16x128xf32>
    %c3 = arith.constant 3 : index
    %c0_27 = arith.constant 0 : index
    %61 = memref.load %arg1[%c3, %c0_27] : memref<10x3xf32, #tpu.memory_space<smem>>
    %62 = vector.broadcast %61 : f32 to vector<16x128xf32>
    %63 = arith.mulf %6, %62 : vector<16x128xf32>
    %c3_28 = arith.constant 3 : index
    %64 = memref.load %arg2[%c3_28] : memref<10xf32, #tpu.memory_space<smem>>
    %65 = vector.broadcast %64 : f32 to vector<16x128xf32>
    %66 = arith.addf %63, %65 : vector<16x128xf32>
    %c3_29 = arith.constant 3 : index
    %c1_30 = arith.constant 1 : index
    %67 = memref.load %arg1[%c3_29, %c1_30] : memref<10x3xf32, #tpu.memory_space<smem>>
    %68 = vector.broadcast %67 : f32 to vector<16x128xf32>
    %69 = arith.mulf %9, %68 : vector<16x128xf32>
    %70 = arith.addf %66, %69 : vector<16x128xf32>
    %c3_31 = arith.constant 3 : index
    %c2_32 = arith.constant 2 : index
    %71 = memref.load %arg1[%c3_31, %c2_32] : memref<10x3xf32, #tpu.memory_space<smem>>
    %72 = vector.broadcast %71 : f32 to vector<16x128xf32>
    %73 = arith.mulf %12, %72 : vector<16x128xf32>
    %74 = arith.addf %70, %73 : vector<16x128xf32>
    %cst_33 = arith.constant 0.000000e+00 : f32
    %75 = vector.broadcast %cst_33 : f32 to vector<16x128xf32>
    %76 = arith.maximumf %74, %75 : vector<16x128xf32>
    %c4 = arith.constant 4 : index
    %c0_34 = arith.constant 0 : index
    %77 = memref.load %arg1[%c4, %c0_34] : memref<10x3xf32, #tpu.memory_space<smem>>
    %78 = vector.broadcast %77 : f32 to vector<16x128xf32>
    %79 = arith.mulf %6, %78 : vector<16x128xf32>
    %c4_35 = arith.constant 4 : index
    %80 = memref.load %arg2[%c4_35] : memref<10xf32, #tpu.memory_space<smem>>
    %81 = vector.broadcast %80 : f32 to vector<16x128xf32>
    %82 = arith.addf %79, %81 : vector<16x128xf32>
    %c4_36 = arith.constant 4 : index
    %c1_37 = arith.constant 1 : index
    %83 = memref.load %arg1[%c4_36, %c1_37] : memref<10x3xf32, #tpu.memory_space<smem>>
    %84 = vector.broadcast %83 : f32 to vector<16x128xf32>
    %85 = arith.mulf %9, %84 : vector<16x128xf32>
    %86 = arith.addf %82, %85 : vector<16x128xf32>
    %c4_38 = arith.constant 4 : index
    %c2_39 = arith.constant 2 : index
    %87 = memref.load %arg1[%c4_38, %c2_39] : memref<10x3xf32, #tpu.memory_space<smem>>
    %88 = vector.broadcast %87 : f32 to vector<16x128xf32>
    %89 = arith.mulf %12, %88 : vector<16x128xf32>
    %90 = arith.addf %86, %89 : vector<16x128xf32>
    %cst_40 = arith.constant 0.000000e+00 : f32
    %91 = vector.broadcast %cst_40 : f32 to vector<16x128xf32>
    %92 = arith.maximumf %90, %91 : vector<16x128xf32>
    %c5 = arith.constant 5 : index
    %c0_41 = arith.constant 0 : index
    %93 = memref.load %arg1[%c5, %c0_41] : memref<10x3xf32, #tpu.memory_space<smem>>
    %94 = vector.broadcast %93 : f32 to vector<16x128xf32>
    %95 = arith.mulf %6, %94 : vector<16x128xf32>
    %c5_42 = arith.constant 5 : index
    %96 = memref.load %arg2[%c5_42] : memref<10xf32, #tpu.memory_space<smem>>
    %97 = vector.broadcast %96 : f32 to vector<16x128xf32>
    %98 = arith.addf %95, %97 : vector<16x128xf32>
    %c5_43 = arith.constant 5 : index
    %c1_44 = arith.constant 1 : index
    %99 = memref.load %arg1[%c5_43, %c1_44] : memref<10x3xf32, #tpu.memory_space<smem>>
    %100 = vector.broadcast %99 : f32 to vector<16x128xf32>
    %101 = arith.mulf %9, %100 : vector<16x128xf32>
    %102 = arith.addf %98, %101 : vector<16x128xf32>
    %c5_45 = arith.constant 5 : index
    %c2_46 = arith.constant 2 : index
    %103 = memref.load %arg1[%c5_45, %c2_46] : memref<10x3xf32, #tpu.memory_space<smem>>
    %104 = vector.broadcast %103 : f32 to vector<16x128xf32>
    %105 = arith.mulf %12, %104 : vector<16x128xf32>
    %106 = arith.addf %102, %105 : vector<16x128xf32>
    %cst_47 = arith.constant 0.000000e+00 : f32
    %107 = vector.broadcast %cst_47 : f32 to vector<16x128xf32>
    %108 = arith.maximumf %106, %107 : vector<16x128xf32>
    %c6 = arith.constant 6 : index
    %c0_48 = arith.constant 0 : index
    %109 = memref.load %arg1[%c6, %c0_48] : memref<10x3xf32, #tpu.memory_space<smem>>
    %110 = vector.broadcast %109 : f32 to vector<16x128xf32>
    %111 = arith.mulf %6, %110 : vector<16x128xf32>
    %c6_49 = arith.constant 6 : index
    %112 = memref.load %arg2[%c6_49] : memref<10xf32, #tpu.memory_space<smem>>
    %113 = vector.broadcast %112 : f32 to vector<16x128xf32>
    %114 = arith.addf %111, %113 : vector<16x128xf32>
    %c6_50 = arith.constant 6 : index
    %c1_51 = arith.constant 1 : index
    %115 = memref.load %arg1[%c6_50, %c1_51] : memref<10x3xf32, #tpu.memory_space<smem>>
    %116 = vector.broadcast %115 : f32 to vector<16x128xf32>
    %117 = arith.mulf %9, %116 : vector<16x128xf32>
    %118 = arith.addf %114, %117 : vector<16x128xf32>
    %c6_52 = arith.constant 6 : index
    %c2_53 = arith.constant 2 : index
    %119 = memref.load %arg1[%c6_52, %c2_53] : memref<10x3xf32, #tpu.memory_space<smem>>
    %120 = vector.broadcast %119 : f32 to vector<16x128xf32>
    %121 = arith.mulf %12, %120 : vector<16x128xf32>
    %122 = arith.addf %118, %121 : vector<16x128xf32>
    %cst_54 = arith.constant 0.000000e+00 : f32
    %123 = vector.broadcast %cst_54 : f32 to vector<16x128xf32>
    %124 = arith.maximumf %122, %123 : vector<16x128xf32>
    %c7 = arith.constant 7 : index
    %c0_55 = arith.constant 0 : index
    %125 = memref.load %arg1[%c7, %c0_55] : memref<10x3xf32, #tpu.memory_space<smem>>
    %126 = vector.broadcast %125 : f32 to vector<16x128xf32>
    %127 = arith.mulf %6, %126 : vector<16x128xf32>
    %c7_56 = arith.constant 7 : index
    %128 = memref.load %arg2[%c7_56] : memref<10xf32, #tpu.memory_space<smem>>
    %129 = vector.broadcast %128 : f32 to vector<16x128xf32>
    %130 = arith.addf %127, %129 : vector<16x128xf32>
    %c7_57 = arith.constant 7 : index
    %c1_58 = arith.constant 1 : index
    %131 = memref.load %arg1[%c7_57, %c1_58] : memref<10x3xf32, #tpu.memory_space<smem>>
    %132 = vector.broadcast %131 : f32 to vector<16x128xf32>
    %133 = arith.mulf %9, %132 : vector<16x128xf32>
    %134 = arith.addf %130, %133 : vector<16x128xf32>
    %c7_59 = arith.constant 7 : index
    %c2_60 = arith.constant 2 : index
    %135 = memref.load %arg1[%c7_59, %c2_60] : memref<10x3xf32, #tpu.memory_space<smem>>
    %136 = vector.broadcast %135 : f32 to vector<16x128xf32>
    %137 = arith.mulf %12, %136 : vector<16x128xf32>
    %138 = arith.addf %134, %137 : vector<16x128xf32>
    %cst_61 = arith.constant 0.000000e+00 : f32
    %139 = vector.broadcast %cst_61 : f32 to vector<16x128xf32>
    %140 = arith.maximumf %138, %139 : vector<16x128xf32>
    %c8 = arith.constant 8 : index
    %c0_62 = arith.constant 0 : index
    %141 = memref.load %arg1[%c8, %c0_62] : memref<10x3xf32, #tpu.memory_space<smem>>
    %142 = vector.broadcast %141 : f32 to vector<16x128xf32>
    %143 = arith.mulf %6, %142 : vector<16x128xf32>
    %c8_63 = arith.constant 8 : index
    %144 = memref.load %arg2[%c8_63] : memref<10xf32, #tpu.memory_space<smem>>
    %145 = vector.broadcast %144 : f32 to vector<16x128xf32>
    %146 = arith.addf %143, %145 : vector<16x128xf32>
    %c8_64 = arith.constant 8 : index
    %c1_65 = arith.constant 1 : index
    %147 = memref.load %arg1[%c8_64, %c1_65] : memref<10x3xf32, #tpu.memory_space<smem>>
    %148 = vector.broadcast %147 : f32 to vector<16x128xf32>
    %149 = arith.mulf %9, %148 : vector<16x128xf32>
    %150 = arith.addf %146, %149 : vector<16x128xf32>
    %c8_66 = arith.constant 8 : index
    %c2_67 = arith.constant 2 : index
    %151 = memref.load %arg1[%c8_66, %c2_67] : memref<10x3xf32, #tpu.memory_space<smem>>
    %152 = vector.broadcast %151 : f32 to vector<16x128xf32>
    %153 = arith.mulf %12, %152 : vector<16x128xf32>
    %154 = arith.addf %150, %153 : vector<16x128xf32>
    %cst_68 = arith.constant 0.000000e+00 : f32
    %155 = vector.broadcast %cst_68 : f32 to vector<16x128xf32>
    %156 = arith.maximumf %154, %155 : vector<16x128xf32>
    %c9 = arith.constant 9 : index
    %c0_69 = arith.constant 0 : index
    %157 = memref.load %arg1[%c9, %c0_69] : memref<10x3xf32, #tpu.memory_space<smem>>
    %158 = vector.broadcast %157 : f32 to vector<16x128xf32>
    %159 = arith.mulf %6, %158 : vector<16x128xf32>
    %c9_70 = arith.constant 9 : index
    %160 = memref.load %arg2[%c9_70] : memref<10xf32, #tpu.memory_space<smem>>
    %161 = vector.broadcast %160 : f32 to vector<16x128xf32>
    %162 = arith.addf %159, %161 : vector<16x128xf32>
    %c9_71 = arith.constant 9 : index
    %c1_72 = arith.constant 1 : index
    %163 = memref.load %arg1[%c9_71, %c1_72] : memref<10x3xf32, #tpu.memory_space<smem>>
    %164 = vector.broadcast %163 : f32 to vector<16x128xf32>
    %165 = arith.mulf %9, %164 : vector<16x128xf32>
    %166 = arith.addf %162, %165 : vector<16x128xf32>
    %c9_73 = arith.constant 9 : index
    %c2_74 = arith.constant 2 : index
    %167 = memref.load %arg1[%c9_73, %c2_74] : memref<10x3xf32, #tpu.memory_space<smem>>
    %168 = vector.broadcast %167 : f32 to vector<16x128xf32>
    %169 = arith.mulf %12, %168 : vector<16x128xf32>
    %170 = arith.addf %166, %169 : vector<16x128xf32>
    %cst_75 = arith.constant 0.000000e+00 : f32
    %171 = vector.broadcast %cst_75 : f32 to vector<16x128xf32>
    %172 = arith.maximumf %170, %171 : vector<16x128xf32>
    %c0_76 = arith.constant 0 : index
    %c0_77 = arith.constant 0 : index
    %173 = memref.load %arg3[%c0_76, %c0_77] : memref<3x10xf32, #tpu.memory_space<smem>>
    %174 = vector.broadcast %173 : f32 to vector<16x128xf32>
    %175 = arith.mulf %28, %174 : vector<16x128xf32>
    %c0_78 = arith.constant 0 : index
    %176 = memref.load %arg4[%c0_78] : memref<3xf32, #tpu.memory_space<smem>>
    %177 = vector.broadcast %176 : f32 to vector<16x128xf32>
    %178 = arith.addf %175, %177 : vector<16x128xf32>
    %c0_79 = arith.constant 0 : index
    %c1_80 = arith.constant 1 : index
    %179 = memref.load %arg3[%c0_79, %c1_80] : memref<3x10xf32, #tpu.memory_space<smem>>
    %180 = vector.broadcast %179 : f32 to vector<16x128xf32>
    %181 = arith.mulf %44, %180 : vector<16x128xf32>
    %182 = arith.addf %178, %181 : vector<16x128xf32>
    %c0_81 = arith.constant 0 : index
    %c2_82 = arith.constant 2 : index
    %183 = memref.load %arg3[%c0_81, %c2_82] : memref<3x10xf32, #tpu.memory_space<smem>>
    %184 = vector.broadcast %183 : f32 to vector<16x128xf32>
    %185 = arith.mulf %60, %184 : vector<16x128xf32>
    %186 = arith.addf %182, %185 : vector<16x128xf32>
    %c0_83 = arith.constant 0 : index
    %c3_84 = arith.constant 3 : index
    %187 = memref.load %arg3[%c0_83, %c3_84] : memref<3x10xf32, #tpu.memory_space<smem>>
    %188 = vector.broadcast %187 : f32 to vector<16x128xf32>
    %189 = arith.mulf %76, %188 : vector<16x128xf32>
    %190 = arith.addf %186, %189 : vector<16x128xf32>
    %c0_85 = arith.constant 0 : index
    %c4_86 = arith.constant 4 : index
    %191 = memref.load %arg3[%c0_85, %c4_86] : memref<3x10xf32, #tpu.memory_space<smem>>
    %192 = vector.broadcast %191 : f32 to vector<16x128xf32>
    %193 = arith.mulf %92, %192 : vector<16x128xf32>
    %194 = arith.addf %190, %193 : vector<16x128xf32>
    %c0_87 = arith.constant 0 : index
    %c5_88 = arith.constant 5 : index
    %195 = memref.load %arg3[%c0_87, %c5_88] : memref<3x10xf32, #tpu.memory_space<smem>>
    %196 = vector.broadcast %195 : f32 to vector<16x128xf32>
    %197 = arith.mulf %108, %196 : vector<16x128xf32>
    %198 = arith.addf %194, %197 : vector<16x128xf32>
    %c0_89 = arith.constant 0 : index
    %c6_90 = arith.constant 6 : index
    %199 = memref.load %arg3[%c0_89, %c6_90] : memref<3x10xf32, #tpu.memory_space<smem>>
    %200 = vector.broadcast %199 : f32 to vector<16x128xf32>
    %201 = arith.mulf %124, %200 : vector<16x128xf32>
    %202 = arith.addf %198, %201 : vector<16x128xf32>
    %c0_91 = arith.constant 0 : index
    %c7_92 = arith.constant 7 : index
    %203 = memref.load %arg3[%c0_91, %c7_92] : memref<3x10xf32, #tpu.memory_space<smem>>
    %204 = vector.broadcast %203 : f32 to vector<16x128xf32>
    %205 = arith.mulf %140, %204 : vector<16x128xf32>
    %206 = arith.addf %202, %205 : vector<16x128xf32>
    %c0_93 = arith.constant 0 : index
    %c8_94 = arith.constant 8 : index
    %207 = memref.load %arg3[%c0_93, %c8_94] : memref<3x10xf32, #tpu.memory_space<smem>>
    %208 = vector.broadcast %207 : f32 to vector<16x128xf32>
    %209 = arith.mulf %156, %208 : vector<16x128xf32>
    %210 = arith.addf %206, %209 : vector<16x128xf32>
    %c0_95 = arith.constant 0 : index
    %c9_96 = arith.constant 9 : index
    %211 = memref.load %arg3[%c0_95, %c9_96] : memref<3x10xf32, #tpu.memory_space<smem>>
    %212 = vector.broadcast %211 : f32 to vector<16x128xf32>
    %213 = arith.mulf %172, %212 : vector<16x128xf32>
    %214 = arith.addf %210, %213 : vector<16x128xf32>
    %c0_97 = arith.constant 0 : index
    %215 = arith.index_cast %3 : i32 to index
    %c0_98 = arith.constant 0 : index
    %216 = vector.load %arg6[%c0_97, %215, %c0_98] : memref<3x16x128xf32, #tpu.memory_space<vmem>>, vector<1x16x128xf32>
    %217 = vector.shape_cast %216 : vector<1x16x128xf32> to vector<16x128xf32>
    %218 = vector.shape_cast %214 : vector<16x128xf32> to vector<1x16x128xf32>
    tpu.vector_store %arg6[%c0_97, %215, %c0_98], %218 {strides = array<i32>} : memref<3x16x128xf32, #tpu.memory_space<vmem>>, vector<1x16x128xf32>,
    %c1_99 = arith.constant 1 : index
    %c0_100 = arith.constant 0 : index
    %219 = memref.load %arg3[%c1_99, %c0_100] : memref<3x10xf32, #tpu.memory_space<smem>>
    %220 = vector.broadcast %219 : f32 to vector<16x128xf32>
    %221 = arith.mulf %28, %220 : vector<16x128xf32>
    %c1_101 = arith.constant 1 : index
    %222 = memref.load %arg4[%c1_101] : memref<3xf32, #tpu.memory_space<smem>>
    %223 = vector.broadcast %222 : f32 to vector<16x128xf32>
    %224 = arith.addf %221, %223 : vector<16x128xf32>
    %c1_102 = arith.constant 1 : index
    %c1_103 = arith.constant 1 : index
    %225 = memref.load %arg3[%c1_102, %c1_103] : memref<3x10xf32, #tpu.memory_space<smem>>
    %226 = vector.broadcast %225 : f32 to vector<16x128xf32>
    %227 = arith.mulf %44, %226 : vector<16x128xf32>
    %228 = arith.addf %224, %227 : vector<16x128xf32>
    %c1_104 = arith.constant 1 : index
    %c2_105 = arith.constant 2 : index
    %229 = memref.load %arg3[%c1_104, %c2_105] : memref<3x10xf32, #tpu.memory_space<smem>>
    %230 = vector.broadcast %229 : f32 to vector<16x128xf32>
    %231 = arith.mulf %60, %230 : vector<16x128xf32>
    %232 = arith.addf %228, %231 : vector<16x128xf32>
    %c1_106 = arith.constant 1 : index
    %c3_107 = arith.constant 3 : index
    %233 = memref.load %arg3[%c1_106, %c3_107] : memref<3x10xf32, #tpu.memory_space<smem>>
    %234 = vector.broadcast %233 : f32 to vector<16x128xf32>
    %235 = arith.mulf %76, %234 : vector<16x128xf32>
    %236 = arith.addf %232, %235 : vector<16x128xf32>
    %c1_108 = arith.constant 1 : index
    %c4_109 = arith.constant 4 : index
    %237 = memref.load %arg3[%c1_108, %c4_109] : memref<3x10xf32, #tpu.memory_space<smem>>
    %238 = vector.broadcast %237 : f32 to vector<16x128xf32>
    %239 = arith.mulf %92, %238 : vector<16x128xf32>
    %240 = arith.addf %236, %239 : vector<16x128xf32>
    %c1_110 = arith.constant 1 : index
    %c5_111 = arith.constant 5 : index
    %241 = memref.load %arg3[%c1_110, %c5_111] : memref<3x10xf32, #tpu.memory_space<smem>>
    %242 = vector.broadcast %241 : f32 to vector<16x128xf32>
    %243 = arith.mulf %108, %242 : vector<16x128xf32>
    %244 = arith.addf %240, %243 : vector<16x128xf32>
    %c1_112 = arith.constant 1 : index
    %c6_113 = arith.constant 6 : index
    %245 = memref.load %arg3[%c1_112, %c6_113] : memref<3x10xf32, #tpu.memory_space<smem>>
    %246 = vector.broadcast %245 : f32 to vector<16x128xf32>
    %247 = arith.mulf %124, %246 : vector<16x128xf32>
    %248 = arith.addf %244, %247 : vector<16x128xf32>
    %c1_114 = arith.constant 1 : index
    %c7_115 = arith.constant 7 : index
    %249 = memref.load %arg3[%c1_114, %c7_115] : memref<3x10xf32, #tpu.memory_space<smem>>
    %250 = vector.broadcast %249 : f32 to vector<16x128xf32>
    %251 = arith.mulf %140, %250 : vector<16x128xf32>
    %252 = arith.addf %248, %251 : vector<16x128xf32>
    %c1_116 = arith.constant 1 : index
    %c8_117 = arith.constant 8 : index
    %253 = memref.load %arg3[%c1_116, %c8_117] : memref<3x10xf32, #tpu.memory_space<smem>>
    %254 = vector.broadcast %253 : f32 to vector<16x128xf32>
    %255 = arith.mulf %156, %254 : vector<16x128xf32>
    %256 = arith.addf %252, %255 : vector<16x128xf32>
    %c1_118 = arith.constant 1 : index
    %c9_119 = arith.constant 9 : index
    %257 = memref.load %arg3[%c1_118, %c9_119] : memref<3x10xf32, #tpu.memory_space<smem>>
    %258 = vector.broadcast %257 : f32 to vector<16x128xf32>
    %259 = arith.mulf %172, %258 : vector<16x128xf32>
    %260 = arith.addf %256, %259 : vector<16x128xf32>
    %c1_120 = arith.constant 1 : index
    %261 = arith.index_cast %3 : i32 to index
    %c0_121 = arith.constant 0 : index
    %262 = vector.load %arg6[%c1_120, %261, %c0_121] : memref<3x16x128xf32, #tpu.memory_space<vmem>>, vector<1x16x128xf32>
    %263 = vector.shape_cast %262 : vector<1x16x128xf32> to vector<16x128xf32>
    %264 = vector.shape_cast %260 : vector<16x128xf32> to vector<1x16x128xf32>
    tpu.vector_store %arg6[%c1_120, %261, %c0_121], %264 {strides = array<i32>} : memref<3x16x128xf32, #tpu.memory_space<vmem>>, vector<1x16x128xf32>,
    %c2_122 = arith.constant 2 : index
    %c0_123 = arith.constant 0 : index
    %265 = memref.load %arg3[%c2_122, %c0_123] : memref<3x10xf32, #tpu.memory_space<smem>>
    %266 = vector.broadcast %265 : f32 to vector<16x128xf32>
    %267 = arith.mulf %28, %266 : vector<16x128xf32>
    %c2_124 = arith.constant 2 : index
    %268 = memref.load %arg4[%c2_124] : memref<3xf32, #tpu.memory_space<smem>>
    %269 = vector.broadcast %268 : f32 to vector<16x128xf32>
    %270 = arith.addf %267, %269 : vector<16x128xf32>
    %c2_125 = arith.constant 2 : index
    %c1_126 = arith.constant 1 : index
    %271 = memref.load %arg3[%c2_125, %c1_126] : memref<3x10xf32, #tpu.memory_space<smem>>
    %272 = vector.broadcast %271 : f32 to vector<16x128xf32>
    %273 = arith.mulf %44, %272 : vector<16x128xf32>
    %274 = arith.addf %270, %273 : vector<16x128xf32>
    %c2_127 = arith.constant 2 : index
    %c2_128 = arith.constant 2 : index
    %275 = memref.load %arg3[%c2_127, %c2_128] : memref<3x10xf32, #tpu.memory_space<smem>>
    %276 = vector.broadcast %275 : f32 to vector<16x128xf32>
    %277 = arith.mulf %60, %276 : vector<16x128xf32>
    %278 = arith.addf %274, %277 : vector<16x128xf32>
    %c2_129 = arith.constant 2 : index
    %c3_130 = arith.constant 3 : index
    %279 = memref.load %arg3[%c2_129, %c3_130] : memref<3x10xf32, #tpu.memory_space<smem>>
    %280 = vector.broadcast %279 : f32 to vector<16x128xf32>
    %281 = arith.mulf %76, %280 : vector<16x128xf32>
    %282 = arith.addf %278, %281 : vector<16x128xf32>
    %c2_131 = arith.constant 2 : index
    %c4_132 = arith.constant 4 : index
    %283 = memref.load %arg3[%c2_131, %c4_132] : memref<3x10xf32, #tpu.memory_space<smem>>
    %284 = vector.broadcast %283 : f32 to vector<16x128xf32>
    %285 = arith.mulf %92, %284 : vector<16x128xf32>
    %286 = arith.addf %282, %285 : vector<16x128xf32>
    %c2_133 = arith.constant 2 : index
    %c5_134 = arith.constant 5 : index
    %287 = memref.load %arg3[%c2_133, %c5_134] : memref<3x10xf32, #tpu.memory_space<smem>>
    %288 = vector.broadcast %287 : f32 to vector<16x128xf32>
    %289 = arith.mulf %108, %288 : vector<16x128xf32>
    %290 = arith.addf %286, %289 : vector<16x128xf32>
    %c2_135 = arith.constant 2 : index
    %c6_136 = arith.constant 6 : index
    %291 = memref.load %arg3[%c2_135, %c6_136] : memref<3x10xf32, #tpu.memory_space<smem>>
    %292 = vector.broadcast %291 : f32 to vector<16x128xf32>
    %293 = arith.mulf %124, %292 : vector<16x128xf32>
    %294 = arith.addf %290, %293 : vector<16x128xf32>
    %c2_137 = arith.constant 2 : index
    %c7_138 = arith.constant 7 : index
    %295 = memref.load %arg3[%c2_137, %c7_138] : memref<3x10xf32, #tpu.memory_space<smem>>
    %296 = vector.broadcast %295 : f32 to vector<16x128xf32>
    %297 = arith.mulf %140, %296 : vector<16x128xf32>
    %298 = arith.addf %294, %297 : vector<16x128xf32>
    %c2_139 = arith.constant 2 : index
    %c8_140 = arith.constant 8 : index
    %299 = memref.load %arg3[%c2_139, %c8_140] : memref<3x10xf32, #tpu.memory_space<smem>>
    %300 = vector.broadcast %299 : f32 to vector<16x128xf32>
    %301 = arith.mulf %156, %300 : vector<16x128xf32>
    %302 = arith.addf %298, %301 : vector<16x128xf32>
    %c2_141 = arith.constant 2 : index
    %c9_142 = arith.constant 9 : index
    %303 = memref.load %arg3[%c2_141, %c9_142] : memref<3x10xf32, #tpu.memory_space<smem>>
    %304 = vector.broadcast %303 : f32 to vector<16x128xf32>
    %305 = arith.mulf %172, %304 : vector<16x128xf32>
    %306 = arith.addf %302, %305 : vector<16x128xf32>
    %c2_143 = arith.constant 2 : index
    %307 = arith.index_cast %3 : i32 to index
    %c0_144 = arith.constant 0 : index
    %308 = vector.load %arg6[%c2_143, %307, %c0_144] : memref<3x16x128xf32, #tpu.memory_space<vmem>>, vector<1x16x128xf32>
    %309 = vector.shape_cast %308 : vector<1x16x128xf32> to vector<16x128xf32>
    %310 = vector.shape_cast %306 : vector<16x128xf32> to vector<1x16x128xf32>
    tpu.vector_store %arg6[%c2_143, %307, %c0_144], %310 {strides = array<i32>} : memref<3x16x128xf32, #tpu.memory_space<vmem>>, vector<1x16x128xf32>,
    %c1_i32_145 = arith.constant 1 : i32
    return
  }
  func.func @transform_0(%arg0: i32) -> (i32, i32) {
    %c0_i32 = arith.constant 0 : i32
    %c0_i32_0 = arith.constant 0 : i32
    %c0_i32_1 = arith.constant 0 : i32
    return %c0_i32, %c0_i32_0 : i32, i32
  }
  func.func @transform_1(%arg0: i32) -> i32 {
    %c0_i32 = arith.constant 0 : i32
    %c0_i32_0 = arith.constant 0 : i32
    return %c0_i32 : i32
  }
  func.func @transform_2(%arg0: i32) -> (i32, i32) {
    %c0_i32 = arith.constant 0 : i32
    %c0_i32_0 = arith.constant 0 : i32
    %c0_i32_1 = arith.constant 0 : i32
    return %c0_i32, %c0_i32_0 : i32, i32
  }
  func.func @transform_3(%arg0: i32) -> i32 {
    %c0_i32 = arith.constant 0 : i32
    %c0_i32_0 = arith.constant 0 : i32
    return %c0_i32 : i32
  }
  func.func @transform_4(%arg0: i32) -> (i32, i32, i32) {
    %c0_i32 = arith.constant 0 : i32
    %c0_i32_0 = arith.constant 0 : i32
    %c0_i32_1 = arith.constant 0 : i32
    return %c0_i32, %arg0, %c0_i32_0 : i32, i32, i32
  }
  func.func @transform_5(%arg0: i32) -> (i32, i32, i32) {
    %c0_i32 = arith.constant 0 : i32
    %c0_i32_0 = arith.constant 0 : i32
    %c0_i32_1 = arith.constant 0 : i32
    return %c0_i32, %arg0, %c0_i32_0 : i32, i32, i32
  }
}

</mosaic_0001>

<llo_original>
// kernel: advisor_forward.1
$region0: #{advisor_forward.1}
  #allocation0 [shape = 'u32[]', space=smem, size = 0x4, offset = 0x4, fixed_abs, tag = 'smem constant byte address 0x4 - core index']
  #allocation1 [shape = 'u32[144,128]{1,0:T(1,128)}', space=vmem, size = 0x12000, scoped, tag = 'internal scratch']
  %s0 = inlined_call_operand.vmem [shape: f32[10,3], index: 0, kind: input, shape index: {}]
  %s1 = inlined_call_operand.vmem [shape: f32[10], index: 1, kind: input, shape index: {}]
  %s2 = inlined_call_operand.vmem [shape: f32[3,10], index: 2, kind: input, shape index: {}]
  %s3 = inlined_call_operand.vmem [shape: f32[3], index: 3, kind: input, shape index: {}]
  %s4 = inlined_call_operand.vmem [shape: f32[3,16,128], index: 4, kind: input, shape index: {}]
  %s5 = inlined_call_operand.vmem [shape: f32[3,16,128], index: 5, kind: output, shape index: {}]
  %s6 = sld [smem:[#allocation0]]
  $region46: #{advisor_forward.1} parent=0
    _
  %s8 = ssub.s32 1, %s6
  %s9 = scalar_select 0, %s8, %s6
  $region1: #{advisor_forward.1} parent=0
    #allocation2 [shape = 'u8[8192]{0}', space=smem, size = 0x2000, scoped, tag = 'input window, operand 0, single buffered']
    #allocation3 [shape = 's32[1]{0}', space=sflag, size = 0x4, scoped, tag = 'scoped memory for advisor_forward.1']
    #allocation4 [shape = 'u8[512]{0}', space=smem, size = 0x200, scoped, tag = 'input window, operand 1, single buffered']
    #allocation5 [shape = 's32[1]{0}', space=sflag, size = 0x4, scoped, tag = 'scoped memory for advisor_forward.1']
    #allocation6 [shape = 'u8[2048]{0}', space=smem, size = 0x800, scoped, tag = 'input window, operand 2, single buffered']
    #allocation7 [shape = 'u8[512]{0}', space=smem, size = 0x200, scoped, tag = 'input window, operand 3, single buffered']
    #allocation8 [shape = 's32[1]{0}', space=sflag, size = 0x4, scoped, tag = 'scoped memory for advisor_forward.1']
    %10 = vsyncpa [#allocation3], 0
    %11 = vsyncpa [#allocation5], 0
    %12 = vsyncpa [#allocation8], 0
    // Predicated region
    $region2: #{advisor_forward.1} parent=1 // pred_check
      _
    $region3: #{advisor_forward.1} parent=1 // pred_check_branch
      %14 = sbr.rel (0) target = $region5
    $region4: #{advisor_forward.1} parent=1 // pred_region
      %s16 = ssub.s32 256, 256
      %17 = vsyncadd [#allocation3], %s16
      %s18 = sshll.u32 %s0, 4
      %s19 = int_to_ptr.vmem [resolvable:$true] %s18
      %24 = dma.vmem_to_smem %s19, 256, [#allocation2], [#allocation3], 128, 128, 8
    $region5: #{advisor_forward.1} parent=1 // pred_fallthru
      _
    // Predicated region
    $region6: #{advisor_forward.1} parent=1 // pred_check
      _
    $region7: #{advisor_forward.1} parent=1 // pred_check_branch
      %26 = sbr.rel (0) target = $region9
    $region8: #{advisor_forward.1} parent=1 // pred_region
      %s28 = ssub.s32 16, 16
      %29 = vsyncadd [#allocation5], %s28
      %s31 = sshll.u32 %s1, 4
      %s32 = int_to_ptr.vmem [resolvable:$true] %s31
      %34 = dma.vmem_to_smem %s32, 16, [#allocation4], [#allocation5]
    $region9: #{advisor_forward.1} parent=1 // pred_fallthru
      _
    // Predicated region
    $region10: #{advisor_forward.1} parent=1 // pred_check
      _
    $region11: #{advisor_forward.1} parent=1 // pred_check_branch
      %36 = sbr.rel (0) target = $region13
    $region12: #{advisor_forward.1} parent=1 // pred_region
      %s38 = ssub.s32 64, 64
      %39 = vsyncadd [#allocation5], %s38
      %s41 = sshll.u32 %s2, 4
      %s42 = int_to_ptr.vmem [resolvable:$true] %s41
      %44 = dma.vmem_to_smem %s42, 64, [#allocation6], [#allocation5]
    $region13: #{advisor_forward.1} parent=1 // pred_fallthru
      _
    // Predicated region
    $region14: #{advisor_forward.1} parent=1 // pred_check
      _
    $region15: #{advisor_forward.1} parent=1 // pred_check_branch
      %46 = sbr.rel (0) target = $region17
    $region16: #{advisor_forward.1} parent=1 // pred_region
      %s48 = ssub.s32 16, 16
      %49 = vsyncadd [#allocation8], %s48
      %s51 = sshll.u32 %s3, 4
      %s52 = int_to_ptr.vmem [resolvable:$true] %s51
      %54 = dma.vmem_to_smem %s52, 16, [#allocation7], [#allocation8]
    $region17: #{advisor_forward.1} parent=1 // pred_fallthru
      _
    // Predicated region
    $region18: #{advisor_forward.1} parent=1 // pred_check
      _
    $region19: #{advisor_forward.1} parent=1 // pred_check_branch
      %56 = sbr.rel (0) target = $region21
    $region20: #{advisor_forward.1} parent=1 // pred_region
      _
    $region21: #{advisor_forward.1} parent=1 // pred_fallthru
      _
    // Predicated region
    $region22: #{advisor_forward.1} parent=1 // pred_check
      _
    $region23: #{advisor_forward.1} parent=1 // pred_check_branch
      %58 = sbr.rel (0) target = $region25
    $region24: #{advisor_forward.1} parent=1 // pred_region
      %59 = dma.done [#allocation3], 256
    $region25: #{advisor_forward.1} parent=1 // pred_fallthru
      _
    // Predicated region
    $region26: #{advisor_forward.1} parent=1 // pred_check
      _
    $region27: #{advisor_forward.1} parent=1 // pred_check_branch
      %61 = sbr.rel (0) target = $region29
    $region28: #{advisor_forward.1} parent=1 // pred_region
      %62 = dma.done [#allocation5], 16
    $region29: #{advisor_forward.1} parent=1 // pred_fallthru
      _
    // Predicated region
    $region30: #{advisor_forward.1} parent=1 // pred_check
      _
    $region31: #{advisor_forward.1} parent=1 // pred_check_branch
      %64 = sbr.rel (0) target = $region33
    $region32: #{advisor_forward.1} parent=1 // pred_region
      %65 = dma.done [#allocation5], 64
    $region33: #{advisor_forward.1} parent=1 // pred_fallthru
      _
    // Predicated region
    $region34: #{advisor_forward.1} parent=1 // pred_check
      _
    $region35: #{advisor_forward.1} parent=1 // pred_check_branch
      %67 = sbr.rel (0) target = $region37
    $region36: #{advisor_forward.1} parent=1 // pred_region
      %68 = dma.done [#allocation8], 16
    $region37: #{advisor_forward.1} parent=1 // pred_fallthru
      _
    %69 = sfence
    %v70 = vld [vmem:[%s4] sm:$0xff]
    %v71 = vld [vmem:[%s4 + $0x8] sm:$0xff]
    %s72 = sadd.s32 0, 16
    %s73 = scalar_lea.vmem %s4, %s72
    %v74 = vld [vmem:[%s73] sm:$0xff]
    %v75 = vld [vmem:[%s73 + $0x8] sm:$0xff]
    %s76 = sadd.s32 0, 32
    %s77 = scalar_lea.vmem %s4, %s76
    %v78 = vld [vmem:[%s77] sm:$0xff]
    %v79 = vld [vmem:[%s77 + $0x8] sm:$0xff]
    %s80 = sld [smem:[#allocation2]]
    %v81 = vstv %s80
    %v82 = vmul.f32 %v70, %v81
    %v83 = vmul.f32 %v71, %v81
    %s84 = sld [smem:[#allocation4]]
    %v85 = vstv %s84
    %v86 = vadd.f32 %v82, %v85
    %v87 = vadd.f32 %v83, %v85
    %s88 = sld [smem:[#allocation2 + $0x1]]
    %v89 = vstv %s88
    %v90 = vmul.f32 %v74, %v89
    %v91 = vmul.f32 %v75, %v89
    %v92 = vadd.f32 %v86, %v90
    %v93 = vadd.f32 %v87, %v91
    %s94 = sld [smem:[#allocation2 + $0x2]]
    %v95 = vstv %s94
    %v96 = vmul.f32 %v78, %v95
    %v97 = vmul.f32 %v79, %v95
    %v98 = vadd.f32 %v92, %v96
    %v99 = vadd.f32 %v93, %v97
    %v100 = vmax.f32 %v98, 0.0
    %v101 = vmax.f32 %v99, 0.0
    %s102 = sld [smem:[#allocation2 + $0x80]]
    %v103 = vstv %s102
    %v104 = vmul.f32 %v70, %v103
    %v105 = vmul.f32 %v71, %v103
    %s106 = sld [smem:[#allocation4 + $0x1]]
    %v107 = vstv %s106
    %v108 = vadd.f32 %v104, %v107
    %v109 = vadd.f32 %v105, %v107
    %s110 = sld [smem:[#allocation2 + $0x81]]
    %v111 = vstv %s110
    %v112 = vmul.f32 %v74, %v111
    %v113 = vmul.f32 %v75, %v111
    %v114 = vadd.f32 %v108, %v112
    %v115 = vadd.f32 %v109, %v113
    %s116 = sld [smem:[#allocation2 + $0x82]]
    %v117 = vstv %s116
    %v118 = vmul.f32 %v78, %v117
    %v119 = vmul.f32 %v79, %v117
    %v120 = vadd.f32 %v114, %v118
    %v121 = vadd.f32 %v115, %v119
    %v122 = vmax.f32 %v120, 0.0
    %v123 = vmax.f32 %v121, 0.0
    %s124 = sld [smem:[#allocation2 + $0x100]]
    %v125 = vstv %s124
    %v126 = vmul.f32 %v70, %v125
    %v127 = vmul.f32 %v71, %v125
    %s128 = sld [smem:[#allocation4 + $0x2]]
    %v129 = vstv %s128
    %v130 = vadd.f32 %v126, %v129
    %v131 = vadd.f32 %v127, %v129
    %s132 = sld [smem:[#allocation2 + $0x101]]
    %v133 = vstv %s132
    %v134 = vmul.f32 %v74, %v133
    %v135 = vmul.f32 %v75, %v133
    %v136 = vadd.f32 %v130, %v134
    %v137 = vadd.f32 %v131, %v135
    %s138 = sld [smem:[#allocation2 + $0x102]]
    %v139 = vstv %s138
    %v140 = vmul.f32 %v78, %v139
    %v141 = vmul.f32 %v79, %v139
    %v142 = vadd.f32 %v136, %v140
    %v143 = vadd.f32 %v137, %v141
    %v144 = vmax.f32 %v142, 0.0
    %v145 = vmax.f32 %v143, 0.0
    %s146 = sld [smem:[#allocation2 + $0x180]]
    %v147 = vstv %s146
    %v148 = vmul.f32 %v70, %v147
    %v149 = vmul.f32 %v71, %v147
    %s150 = sld [smem:[#allocation4 + $0x3]]
    %v151 = vstv %s150
    %v152 = vadd.f32 %v148, %v151
    %v153 = vadd.f32 %v149, %v151
    %s154 = sld [smem:[#allocation2 + $0x181]]
    %v155 = vstv %s154
    %v156 = vmul.f32 %v74, %v155
    %v157 = vmul.f32 %v75, %v155
    %v158 = vadd.f32 %v152, %v156
    %v159 = vadd.f32 %v153, %v157
    %s160 = sld [smem:[#allocation2 + $0x182]]
    %v161 = vstv %s160
    %v162 = vmul.f32 %v78, %v161
    %v163 = vmul.f32 %v79, %v161
    %v164 = vadd.f32 %v158, %v162
    %v165 = vadd.f32 %v159, %v163
    %v166 = vmax.f32 %v164, 0.0
    %v167 = vmax.f32 %v165, 0.0
    %s168 = sld [smem:[#allocation2 + $0x200]]
    %v169 = vstv %s168
    %v170 = vmul.f32 %v70, %v169
    %v171 = vmul.f32 %v71, %v169
    %s172 = sld [smem:[#allocation4 + $0x4]]
    %v173 = vstv %s172
    %v174 = vadd.f32 %v170, %v173
    %v175 = vadd.f32 %v171, %v173
    %s176 = sld [smem:[#allocation2 + $0x201]]
    %v177 = vstv %s176
    %v178 = vmul.f32 %v74, %v177
    %v179 = vmul.f32 %v75, %v177
    %v180 = vadd.f32 %v174, %v178
    %v181 = vadd.f32 %v175, %v179
    %s182 = sld [smem:[#allocation2 + $0x202]]
    %v183 = vstv %s182
    %v184 = vmul.f32 %v78, %v183
    %v185 = vmul.f32 %v79, %v183
    %v186 = vadd.f32 %v180, %v184
    %v187 = vadd.f32 %v181, %v185
    %v188 = vmax.f32 %v186, 0.0
    %v189 = vmax.f32 %v187, 0.0
    %s190 = sld [smem:[#allocation2 + $0x280]]
    %v191 = vstv %s190
    %v192 = vmul.f32 %v70, %v191
    %v193 = vmul.f32 %v71, %v191
    %s194 = sld [smem:[#allocation4 + $0x5]]
    %v195 = vstv %s194
    %v196 = vadd.f32 %v192, %v195
    %v197 = vadd.f32 %v193, %v195
    %s198 = sld [smem:[#allocation2 + $0x281]]
    %v199 = vstv %s198
    %v200 = vmul.f32 %v74, %v199
    %v201 = vmul.f32 %v75, %v199
    %v202 = vadd.f32 %v196, %v200
    %v203 = vadd.f32 %v197, %v201
    %s204 = sld [smem:[#allocation2 + $0x282]]
    %v205 = vstv %s204
    %v206 = vmul.f32 %v78, %v205
    %v207 = vmul.f32 %v79, %v205
    %v208 = vadd.f32 %v202, %v206
    %v209 = vadd.f32 %v203, %v207
    %v210 = vmax.f32 %v208, 0.0
    %v211 = vmax.f32 %v209, 0.0
    %s212 = sld [smem:[#allocation2 + $0x300]]
    %v213 = vstv %s212
    %v214 = vmul.f32 %v70, %v213
    %v215 = vmul.f32 %v71, %v213
    %s216 = sld [smem:[#allocation4 + $0x6]]
    %v217 = vstv %s216
    %v218 = vadd.f32 %v214, %v217
    %v219 = vadd.f32 %v215, %v217
    %s220 = sld [smem:[#allocation2 + $0x301]]
    %v221 = vstv %s220
    %v222 = vmul.f32 %v74, %v221
    %v223 = vmul.f32 %v75, %v221
    %v224 = vadd.f32 %v218, %v222
    %v225 = vadd.f32 %v219, %v223
    %s226 = sld [smem:[#allocation2 + $0x302]]
    %v227 = vstv %s226
    %v228 = vmul.f32 %v78, %v227
    %v229 = vmul.f32 %v79, %v227
    %v230 = vadd.f32 %v224, %v228
    %v231 = vadd.f32 %v225, %v229
    %v232 = vmax.f32 %v230, 0.0
    %v233 = vmax.f32 %v231, 0.0
    %s234 = sld [smem:[#allocation2 + $0x380]]
    %v235 = vstv %s234
    %v236 = vmul.f32 %v70, %v235
    %v237 = vmul.f32 %v71, %v235
    %s238 = sld [smem:[#allocation4 + $0x7]]
    %v239 = vstv %s238
    %v240 = vadd.f32 %v236, %v239
    %v241 = vadd.f32 %v237, %v239
    %s242 = sld [smem:[#allocation2 + $0x381]]
    %v243 = vstv %s242
    %v244 = vmul.f32 %v74, %v243
    %v245 = vmul.f32 %v75, %v243
    %v246 = vadd.f32 %v240, %v244
    %v247 = vadd.f32 %v241, %v245
    %s248 = sld [smem:[#allocation2 + $0x382]]
    %v249 = vstv %s248
    %v250 = vmul.f32 %v78, %v249
    %v251 = vmul.f32 %v79, %v249
    %v252 = vadd.f32 %v246, %v250
    %v253 = vadd.f32 %v247, %v251
    %v254 = vmax.f32 %v252, 0.0
    %v255 = vmax.f32 %v253, 0.0
    %s256 = sld [smem:[#allocation2 + $0x400]]
    %v257 = vstv %s256
    %v258 = vmul.f32 %v70, %v257
    %v259 = vmul.f32 %v71, %v257
    %s260 = sld [smem:[#allocation4 + $0x8]]
    %v261 = vstv %s260
    %v262 = vadd.f32 %v258, %v261
    %v263 = vadd.f32 %v259, %v261
    %s264 = sld [smem:[#allocation2 + $0x401]]
    %v265 = vstv %s264
    %v266 = vmul.f32 %v74, %v265
    %v267 = vmul.f32 %v75, %v265
    %v268 = vadd.f32 %v262, %v266
    %v269 = vadd.f32 %v263, %v267
    %s270 = sld [smem:[#allocation2 + $0x402]]
    %v271 = vstv %s270
    %v272 = vmul.f32 %v78, %v271
    %v273 = vmul.f32 %v79, %v271
    %v274 = vadd.f32 %v268, %v272
    %v275 = vadd.f32 %v269, %v273
    %v276 = vmax.f32 %v274, 0.0
    %v277 = vmax.f32 %v275, 0.0
    %s278 = sld [smem:[#allocation2 + $0x480]]
    %v279 = vstv %s278
    %v280 = vmul.f32 %v70, %v279
    %v281 = vmul.f32 %v71, %v279
    %s282 = sld [smem:[#allocation4 + $0x9]]
    %v283 = vstv %s282
    %v284 = vadd.f32 %v280, %v283
    %v285 = vadd.f32 %v281, %v283
    %s286 = sld [smem:[#allocation2 + $0x481]]
    %v287 = vstv %s286
    %v288 = vmul.f32 %v74, %v287
    %v289 = vmul.f32 %v75, %v287
    %v290 = vadd.f32 %v284, %v288
    %v291 = vadd.f32 %v285, %v289
    %s292 = sld [smem:[#allocation2 + $0x482]]
    %v293 = vstv %s292
    %v294 = vmul.f32 %v78, %v293
    %v295 = vmul.f32 %v79, %v293
    %v296 = vadd.f32 %v290, %v294
    %v297 = vadd.f32 %v291, %v295
    %v298 = vmax.f32 %v296, 0.0
    %v299 = vmax.f32 %v297, 0.0
    %s300 = sld [smem:[#allocation6]]
    %v301 = vstv %s300
    %v302 = vmul.f32 %v100, %v301
    %v303 = vmul.f32 %v101, %v301
    %s304 = sld [smem:[#allocation7]]
    %v305 = vstv %s304
    %v306 = vadd.f32 %v302, %v305
    %v307 = vadd.f32 %v303, %v305
    %s308 = sld [smem:[#allocation6 + $0x1]]
    %v309 = vstv %s308
    %v310 = vmul.f32 %v122, %v309
    %v311 = vmul.f32 %v123, %v309
    %v312 = vadd.f32 %v306, %v310
    %v313 = vadd.f32 %v307, %v311
    %s314 = sld [smem:[#allocation6 + $0x2]]
    %v315 = vstv %s314
    %v316 = vmul.f32 %v144, %v315
    %v317 = vmul.f32 %v145, %v315
    %v318 = vadd.f32 %v312, %v316
    %v319 = vadd.f32 %v313, %v317
    %s320 = sld [smem:[#allocation6 + $0x3]]
    %v321 = vstv %s320
    %v322 = vmul.f32 %v166, %v321
    %v323 = vmul.f32 %v167, %v321
    %v324 = vadd.f32 %v318, %v322
    %v325 = vadd.f32 %v319, %v323
    %s326 = sld [smem:[#allocation6 + $0x4]]
    %v327 = vstv %s326
    %v328 = vmul.f32 %v188, %v327
    %v329 = vmul.f32 %v189, %v327
    %v330 = vadd.f32 %v324, %v328
    %v331 = vadd.f32 %v325, %v329
    %s332 = sld [smem:[#allocation6 + $0x5]]
    %v333 = vstv %s332
    %v334 = vmul.f32 %v210, %v333
    %v335 = vmul.f32 %v211, %v333
    %v336 = vadd.f32 %v330, %v334
    %v337 = vadd.f32 %v331, %v335
    %s338 = sld [smem:[#allocation6 + $0x6]]
    %v339 = vstv %s338
    %v340 = vmul.f32 %v232, %v339
    %v341 = vmul.f32 %v233, %v339
    %v342 = vadd.f32 %v336, %v340
    %v343 = vadd.f32 %v337, %v341
    %s344 = sld [smem:[#allocation6 + $0x7]]
    %v345 = vstv %s344
    %v346 = vmul.f32 %v254, %v345
    %v347 = vmul.f32 %v255, %v345
    %v348 = vadd.f32 %v342, %v346
    %v349 = vadd.f32 %v343, %v347
    %s350 = sld [smem:[#allocation6 + $0x8]]
    %v351 = vstv %s350
    %v352 = vmul.f32 %v276, %v351
    %v353 = vmul.f32 %v277, %v351
    %v354 = vadd.f32 %v348, %v352
    %v355 = vadd.f32 %v349, %v353
    %s356 = sld [smem:[#allocation6 + $0x9]]
    %v357 = vstv %s356
    %v358 = vmul.f32 %v298, %v357
    %v359 = vmul.f32 %v299, %v357
    %v360 = vadd.f32 %v354, %v358
    %v361 = vadd.f32 %v355, %v359
    %362 = vst [vmem:[%s5] sm:$0xff] %v360
    %363 = vst [vmem:[%s5 + $0x8] sm:$0xff] %v361
    %s364 = sld [smem:[#allocation6 + $0x80]]
    %v365 = vstv %s364
    %v366 = vmul.f32 %v100, %v365
    %v367 = vmul.f32 %v101, %v365
    %s368 = sld [smem:[#allocation7 + $0x1]]
    %v369 = vstv %s368
    %v370 = vadd.f32 %v366, %v369
    %v371 = vadd.f32 %v367, %v369
    %s372 = sld [smem:[#allocation6 + $0x81]]
    %v373 = vstv %s372
    %v374 = vmul.f32 %v122, %v373
    %v375 = vmul.f32 %v123, %v373
    %v376 = vadd.f32 %v370, %v374
    %v377 = vadd.f32 %v371, %v375
    %s378 = sld [smem:[#allocation6 + $0x82]]
    %v379 = vstv %s378
    %v380 = vmul.f32 %v144, %v379
    %v381 = vmul.f32 %v145, %v379
    %v382 = vadd.f32 %v376, %v380
    %v383 = vadd.f32 %v377, %v381
    %s384 = sld [smem:[#allocation6 + $0x83]]
    %v385 = vstv %s384
    %v386 = vmul.f32 %v166, %v385
    %v387 = vmul.f32 %v167, %v385
    %v388 = vadd.f32 %v382, %v386
    %v389 = vadd.f32 %v383, %v387
    %s390 = sld [smem:[#allocation6 + $0x84]]
    %v391 = vstv %s390
    %v392 = vmul.f32 %v188, %v391
    %v393 = vmul.f32 %v189, %v391
    %v394 = vadd.f32 %v388, %v392
    %v395 = vadd.f32 %v389, %v393
    %s396 = sld [smem:[#allocation6 + $0x85]]
    %v397 = vstv %s396
    %v398 = vmul.f32 %v210, %v397
    %v399 = vmul.f32 %v211, %v397
    %v400 = vadd.f32 %v394, %v398
    %v401 = vadd.f32 %v395, %v399
    %s402 = sld [smem:[#allocation6 + $0x86]]
    %v403 = vstv %s402
    %v404 = vmul.f32 %v232, %v403
    %v405 = vmul.f32 %v233, %v403
    %v406 = vadd.f32 %v400, %v404
    %v407 = vadd.f32 %v401, %v405
    %s408 = sld [smem:[#allocation6 + $0x87]]
    %v409 = vstv %s408
    %v410 = vmul.f32 %v254, %v409
    %v411 = vmul.f32 %v255, %v409
    %v412 = vadd.f32 %v406, %v410
    %v413 = vadd.f32 %v407, %v411
    %s414 = sld [smem:[#allocation6 + $0x88]]
    %v415 = vstv %s414
    %v416 = vmul.f32 %v276, %v415
    %v417 = vmul.f32 %v277, %v415
    %v418 = vadd.f32 %v412, %v416
    %v419 = vadd.f32 %v413, %v417
    %s420 = sld [smem:[#allocation6 + $0x89]]
    %v421 = vstv %s420
    %v422 = vmul.f32 %v298, %v421
    %v423 = vmul.f32 %v299, %v421
    %v424 = vadd.f32 %v418, %v422
    %v425 = vadd.f32 %v419, %v423
    %s426 = scalar_lea.vmem %s5, %s72
    %427 = vst [vmem:[%s426] sm:$0xff] %v424
    %428 = vst [vmem:[%s426 + $0x8] sm:$0xff] %v425
    %s429 = sld [smem:[#allocation6 + $0x100]]
    %v430 = vstv %s429
    %v431 = vmul.f32 %v100, %v430
    %v432 = vmul.f32 %v101, %v430
    %s433 = sld [smem:[#allocation7 + $0x2]]
    %v434 = vstv %s433
    %v435 = vadd.f32 %v431, %v434
    %v436 = vadd.f32 %v432, %v434
    %s437 = sld [smem:[#allocation6 + $0x101]]
    %v438 = vstv %s437
    %v439 = vmul.f32 %v122, %v438
    %v440 = vmul.f32 %v123, %v438
    %v441 = vadd.f32 %v435, %v439
    %v442 = vadd.f32 %v436, %v440
    %s443 = sld [smem:[#allocation6 + $0x102]]
    %v444 = vstv %s443
    %v445 = vmul.f32 %v144, %v444
    %v446 = vmul.f32 %v145, %v444
    %v447 = vadd.f32 %v441, %v445
    %v448 = vadd.f32 %v442, %v446
    %s449 = sld [smem:[#allocation6 + $0x103]]
    %v450 = vstv %s449
    %v451 = vmul.f32 %v166, %v450
    %v452 = vmul.f32 %v167, %v450
    %v453 = vadd.f32 %v447, %v451
    %v454 = vadd.f32 %v448, %v452
    %s455 = sld [smem:[#allocation6 + $0x104]]
    %v456 = vstv %s455
    %v457 = vmul.f32 %v188, %v456
    %v458 = vmul.f32 %v189, %v456
    %v459 = vadd.f32 %v453, %v457
    %v460 = vadd.f32 %v454, %v458
    %s461 = sld [smem:[#allocation6 + $0x105]]
    %v462 = vstv %s461
    %v463 = vmul.f32 %v210, %v462
    %v464 = vmul.f32 %v211, %v462
    %v465 = vadd.f32 %v459, %v463
    %v466 = vadd.f32 %v460, %v464
    %s467 = sld [smem:[#allocation6 + $0x106]]
    %v468 = vstv %s467
    %v469 = vmul.f32 %v232, %v468
    %v470 = vmul.f32 %v233, %v468
    %v471 = vadd.f32 %v465, %v469
    %v472 = vadd.f32 %v466, %v470
    %s473 = sld [smem:[#allocation6 + $0x107]]
    %v474 = vstv %s473
    %v475 = vmul.f32 %v254, %v474
    %v476 = vmul.f32 %v255, %v474
    %v477 = vadd.f32 %v471, %v475
    %v478 = vadd.f32 %v472, %v476
    %s479 = sld [smem:[#allocation6 + $0x108]]
    %v480 = vstv %s479
    %v481 = vmul.f32 %v276, %v480
    %v482 = vmul.f32 %v277, %v480
    %v483 = vadd.f32 %v477, %v481
    %v484 = vadd.f32 %v478, %v482
    %s485 = sld [smem:[#allocation6 + $0x109]]
    %v486 = vstv %s485
    %v487 = vmul.f32 %v298, %v486
    %v488 = vmul.f32 %v299, %v486
    %v489 = vadd.f32 %v483, %v487
    %v490 = vadd.f32 %v484, %v488
    %s491 = scalar_lea.vmem %s5, %s76
    %492 = vst [vmem:[%s491] sm:$0xff] %v489
    %493 = vst [vmem:[%s491 + $0x8] sm:$0xff] %v490
    // Predicated region
    $region38: #{advisor_forward.1} parent=1 // pred_check
      _
    $region39: #{advisor_forward.1} parent=1 // pred_check_branch
      %495 = sbr.rel (0) target = $region41
    $region40: #{advisor_forward.1} parent=1 // pred_region
      _
    $region41: #{advisor_forward.1} parent=1 // pred_fallthru
      _
    // Predicated region
    $region42: #{advisor_forward.1} parent=1 // pred_check
      _
    $region43: #{advisor_forward.1} parent=1 // pred_check_branch
      %497 = sbr.rel (0) target = $region45
    $region44: #{advisor_forward.1} parent=1 // pred_region
      _
    $region45: #{advisor_forward.1} parent=1 // pred_fallthru
      _
    %498 = vsyncpa [#allocation3], 1
    %499 = vsyncpa [#allocation5], 1
    %500 = vsyncpa [#allocation8], 1

</llo_original>
